<compile_context>
chip_gen: v5e
topology: v5e:2x2
jax: 0.10.0
libtpu: 0.0.40
codegen_flags: <defaults>
</compile_context>

<pallas_src>
import functools
import math

import jax
import jax.numpy as jnp
import numpy as np
from jax.experimental import pallas as pl
from jax.experimental.pallas import tpu as pltpu


def _block_kernel(*refs, H, W, Cin, Cout, has_scale_shift):
    # refs: xp, w9, bias, g[, scale, shift], out
    if has_scale_shift:
        xp_ref, w_ref, b_ref, g_ref, scale_ref, shift_ref, o_ref = refs
    else:
        xp_ref, w_ref, b_ref, g_ref, o_ref = refs
        scale_ref = shift_ref = None

    HW = H * W
    # (H+2, W+2, Cin); stored bf16 in HBM (half DMA), sliced/reshaped as f32.
    xp = xp_ref[0].astype(jnp.float32)

    # 3x3 "same" conv = 9 shifted-tap matmuls accumulated in f32.
    # Each tap: (Cout, Cin) . (H*W, Cin)^T  -> (Cout, H*W)  (lane-dense).
    nt_dims = (((1,), (1,)), ((), ()))
    acc = jnp.zeros((Cout, HW), jnp.float32)
    for tap in range(9):
        dy, dx = divmod(tap, 3)
        patch = xp[dy:dy + H, dx:dx + W, :].reshape(HW, Cin).astype(jnp.bfloat16)
        acc = acc + jax.lax.dot_general(
            w_ref[tap], patch, nt_dims, preferred_element_type=jnp.float32)

    acc = acc + b_ref[...]                       # conv bias, (Cout, 1) lane-broadcast

    # RMSNorm over channels: F.normalize(x, dim=1) * g * sqrt(Cout)
    # max(||x||, eps) == sqrt(max(sumsq, eps^2)), eps = 1e-12  -> single rsqrt (EUP).
    sumsq = jnp.sum(acc * acc, axis=0, keepdims=True)            # (1, H*W)
    inv_norm = jax.lax.rsqrt(jnp.maximum(sumsq, 1e-24))
    y = acc * inv_norm * g_ref[...]              # g already folded with sqrt(Cout)

    if has_scale_shift:                          # statically compiled out when absent
        y = y * scale_ref[0] + shift_ref[0]      # scale already carries the +1

    y = y * jax.nn.sigmoid(y)                    # SiLU; Dropout(p=0.0) is the identity
    o_ref[0] = y.astype(o_ref.dtype)             # (Cout, H*W) dense store


@jax.jit
def block_forward(x_nchw, w_oihw, bias, g, scale_shift=None):
    """Forward pass of Block.  x_nchw: (B, Cin, H, W) float32 -> (B, Cout, H, W)."""
    B, Cin, H, W = x_nchw.shape
    Cout = w_oihw.shape[0]
    HW = H * W

    # NCHW -> NHWC + 1px zero halo, stored bf16 (one fused XLA pass, half the bytes).
    xp = jnp.pad(jnp.transpose(x_nchw, (0, 2, 3, 1)),
                 ((0, 0), (1, 1), (1, 1), (0, 0))).astype(jnp.bfloat16)

    # OIHW -> (tap=dy*3+dx, Cout, Cin) bf16; all parameter reshapes stay in the wrapper.
    w9 = jnp.transpose(w_oihw, (2, 3, 0, 1)).reshape(9, Cout, Cin).astype(jnp.bfloat16)
    b2 = bias.astype(jnp.float32).reshape(Cout, 1)
    g2 = g.astype(jnp.float32).reshape(Cout, 1) * math.sqrt(Cout)

    inputs = [xp, w9, b2, g2]
    in_specs = [
        pl.BlockSpec((1, H + 2, W + 2, Cin), lambda i: (i, 0, 0, 0)),
        pl.BlockSpec((9, Cout, Cin), lambda i: (0, 0, 0)),
        pl.BlockSpec((Cout, 1), lambda i: (0, 0)),
        pl.BlockSpec((Cout, 1), lambda i: (0, 0)),
    ]

    has_ss = scale_shift is not None
    if has_ss:
        s, sh = scale_shift                      # each (B, Cout, 1, 1)
        inputs += [s.reshape(B, Cout, 1).astype(jnp.float32) + 1.0,
                   sh.reshape(B, Cout, 1).astype(jnp.float32)]
        in_specs += [pl.BlockSpec((1, Cout, 1), lambda i: (i, 0, 0)),
                     pl.BlockSpec((1, Cout, 1), lambda i: (i, 0, 0))]

    kernel = functools.partial(_block_kernel, H=H, W=W, Cin=Cin, Cout=Cout,
                               has_scale_shift=has_ss)

    # Kernel output (B, Cout, H*W) is already NCHW-ordered and lane-dense:
    # only a free reshape remains in the wrapper (no output transpose).
    out = pl.pallas_call(
        kernel,
        out_shape=jax.ShapeDtypeStruct((B, Cout, HW), x_nchw.dtype),
        grid_spec=pltpu.PrefetchScalarGridSpec(
            num_scalar_prefetch=0,
            grid=(B,),                           # one batch element per grid step
            in_specs=in_specs,
            out_specs=pl.BlockSpec((1, Cout, HW), lambda i: (i, 0, 0)),
        ),
        compiler_params=pltpu.CompilerParams(
            dimension_semantics=("parallel",)),
    )(*inputs)

    return out.reshape(B, Cout, H, W)


def _reference_forward(x, w_oihw, bias, g, scale_shift=None, inputs_in_bf16=False):
    """Pure-JAX reference of the PyTorch module.  inputs_in_bf16 rounds x and the
    conv weights to bf16 (like the kernel's MXU inputs) for a precision-matched check."""
    Cout = w_oihw.shape[0]
    if inputs_in_bf16:
        x = x.astype(jnp.bfloat16).astype(jnp.float32)
        w_oihw = w_oihw.astype(jnp.bfloat16).astype(jnp.float32)
    y = jax.lax.conv_general_dilated(
        x, w_oihw, window_strides=(1, 1), padding="SAME",
        dimension_numbers=("NCHW", "OIHW", "NCHW"))
    y = y + bias[None, :, None, None]
    norm = jnp.maximum(jnp.sqrt(jnp.sum(y * y, axis=1, keepdims=True)), 1e-12)
    y = y / norm * g[None, :, None, None] * math.sqrt(Cout)
    if scale_shift is not None:
        s, sh = scale_shift
        y = y * (s + 1.0) + sh
    return y * jax.nn.sigmoid(y)


if __name__ == "__main__":
    key = jax.random.PRNGKey(0)
    B, Cin, Cout, H, W = 2, 4, 8, 16, 16

    k1, k2, k3, k4, k5 = jax.random.split(key, 5)
    x = jax.random.normal(k1, (B, Cin, H, W), dtype=jnp.float32)

    # Deterministic parameter init (shapes from nn.Conv2d / RMSNorm in __init__).
    fan_in = Cin * 3 * 3
    bound = 1.0 / math.sqrt(fan_in)
    w = jax.random.uniform(k2, (Cout, Cin, 3, 3), jnp.float32, -bound, bound)
    b = jax.random.uniform(k3, (Cout,), jnp.float32, -bound, bound)
    g = jnp.ones((Cout,), jnp.float32)           # RMSNorm.g initialised to ones

    scale = 0.1 * jax.random.normal(k4, (B, Cout, 1, 1), jnp.float32)
    shift = 0.1 * jax.random.normal(k5, (B, Cout, 1, 1), jnp.float32)

    out_ss = jax.block_until_ready(block_forward(x, w, b, g, (scale, shift)))
    out_none = jax.block_until_ready(block_forward(x, w, b, g))

    # Precision-matched reference (same bf16 rounding of x / conv weights): tight tol.
    ref_ss_m = _reference_forward(x, w, b, g, (scale, shift), inputs_in_bf16=True)
    ref_none_m = _reference_forward(x, w, b, g, None, inputs_in_bf16=True)
    np.testing.assert_allclose(np.asarray(out_ss), np.asarray(ref_ss_m),
                               rtol=2e-3, atol=2e-3)
    np.testing.assert_allclose(np.asarray(out_none), np.asarray(ref_none_m),
                               rtol=2e-3, atol=2e-3)

    # Full-f32 reference: loose tol because the kernel uses bf16 conv inputs.
    ref_ss = _reference_forward(x, w, b, g, (scale, shift))
    ref_none = _reference_forward(x, w, b, g, None)
    np.testing.assert_allclose(np.asarray(out_ss), np.asarray(ref_ss),
                               rtol=5e-2, atol=5e-2)
    np.testing.assert_allclose(np.asarray(out_none), np.asarray(ref_none),
                               rtol=5e-2, atol=5e-2)

    print("KERNEL_OK")
</pallas_src>

<mosaic_0001>
module attributes {stable_mosaic.version = 11 : i64} {
  func.func @_block_kernel(%arg0: i32, %arg1: memref<1x18x18x4xbf16, #tpu.memory_space<vmem>>, %arg2: memref<9x8x4xbf16, #tpu.memory_space<vmem>>, %arg3: memref<8x1xf32, #tpu.memory_space<vmem>>, %arg4: memref<8x1xf32, #tpu.memory_space<vmem>>, %arg5: memref<1x8x1xf32, #tpu.memory_space<vmem>>, %arg6: memref<1x8x1xf32, #tpu.memory_space<vmem>>, %arg7: memref<1x8x256xf32, #tpu.memory_space<vmem>>) attributes {dimension_semantics = [#tpu.dimension_semantics<parallel>], iteration_bounds = array<i64: 2>, scalar_prefetch = 0 : i64, scratch_operands = 0 : i64, tpu.core_type = #tpu.core_type<tc>, window_params = [{transform_indices = @transform_0, window_bounds = array<i64: 1, 18, 18, 4>}, {pipeline_mode = #tpu.pipeline_mode<synchronous>, transform_indices = @transform_1, window_bounds = array<i64: 9, 8, 4>}, {pipeline_mode = #tpu.pipeline_mode<synchronous>, transform_indices = @transform_2, window_bounds = array<i64: 8, 1>}, {pipeline_mode = #tpu.pipeline_mode<synchronous>, transform_indices = @transform_3, window_bounds = array<i64: 8, 1>}, {transform_indices = @transform_4, window_bounds = array<i64: 1, 8, 1>}, {transform_indices = @transform_5, window_bounds = array<i64: 1, 8, 1>}, {transform_indices = @transform_6, window_bounds = array<i64: 1, 8, 256>}]} {
    %c0 = arith.constant 0 : index
    %c0_0 = arith.constant 0 : index
    %c0_1 = arith.constant 0 : index
    %c0_2 = arith.constant 0 : index
    %0 = vector.load %arg1[%c0, %c0_0, %c0_1, %c0_2] : memref<1x18x18x4xbf16, #tpu.memory_space<vmem>>, vector<1x18x18x4xbf16>
    %1 = vector.shape_cast %0 : vector<1x18x18x4xbf16> to vector<18x18x4xbf16>
    %2 = arith.extf %1 : vector<18x18x4xbf16> to vector<18x18x4xf32>
    %cst = arith.constant 0.000000e+00 : f32
    %3 = vector.broadcast %cst : f32 to vector<8x256xf32>
    %4 = vector.extract_strided_slice %2 {offsets = [0, 0, 0], sizes = [16, 16, 4], strides = [1, 1, 1]} : vector<18x18x4xf32> to vector<16x16x4xf32>
    %5 = vector.shape_cast %4 : vector<16x16x4xf32> to vector<256x4xf32>
    %6 = arith.truncf %5 : vector<256x4xf32> to vector<256x4xbf16>
    %c0_3 = arith.constant 0 : index
    %c0_4 = arith.constant 0 : index
    %c0_5 = arith.constant 0 : index
    %7 = vector.load %arg2[%c0_3, %c0_4, %c0_5] : memref<9x8x4xbf16, #tpu.memory_space<vmem>>, vector<1x8x4xbf16>
    %8 = vector.shape_cast %7 : vector<1x8x4xbf16> to vector<8x4xbf16>
    %cst_6 = arith.constant dense<0.000000e+00> : vector<8x256xf32>
    %9 = tpu.matmul %8, %6, %cst_6 {dimension_numbers = #tpu.dot_dimension_numbers<[1], [1], [0], [0], [0, 0, 1, 0], [], []>} : vector<8x4xbf16>, vector<256x4xbf16>, vector<8x256xf32> -> vector<8x256xf32>
    %10 = arith.addf %3, %9 : vector<8x256xf32>
    %11 = vector.extract_strided_slice %2 {offsets = [0, 1, 0], sizes = [16, 16, 4], strides = [1, 1, 1]} : vector<18x18x4xf32> to vector<16x16x4xf32>
    %12 = vector.shape_cast %11 : vector<16x16x4xf32> to vector<256x4xf32>
    %13 = arith.truncf %12 : vector<256x4xf32> to vector<256x4xbf16>
    %c1 = arith.constant 1 : index
    %c0_7 = arith.constant 0 : index
    %c0_8 = arith.constant 0 : index
    %14 = vector.load %arg2[%c1, %c0_7, %c0_8] : memref<9x8x4xbf16, #tpu.memory_space<vmem>>, vector<1x8x4xbf16>
    %15 = vector.shape_cast %14 : vector<1x8x4xbf16> to vector<8x4xbf16>
    %cst_9 = arith.constant dense<0.000000e+00> : vector<8x256xf32>
    %16 = tpu.matmul %15, %13, %cst_9 {dimension_numbers = #tpu.dot_dimension_numbers<[1], [1], [0], [0], [0, 0, 1, 0], [], []>} : vector<8x4xbf16>, vector<256x4xbf16>, vector<8x256xf32> -> vector<8x256xf32>
    %17 = arith.addf %10, %16 : vector<8x256xf32>
    %18 = vector.extract_strided_slice %2 {offsets = [0, 2, 0], sizes = [16, 16, 4], strides = [1, 1, 1]} : vector<18x18x4xf32> to vector<16x16x4xf32>
    %19 = vector.shape_cast %18 : vector<16x16x4xf32> to vector<256x4xf32>
    %20 = arith.truncf %19 : vector<256x4xf32> to vector<256x4xbf16>
    %c2 = arith.constant 2 : index
    %c0_10 = arith.constant 0 : index
    %c0_11 = arith.constant 0 : index
    %21 = vector.load %arg2[%c2, %c0_10, %c0_11] : memref<9x8x4xbf16, #tpu.memory_space<vmem>>, vector<1x8x4xbf16>
    %22 = vector.shape_cast %21 : vector<1x8x4xbf16> to vector<8x4xbf16>
    %cst_12 = arith.constant dense<0.000000e+00> : vector<8x256xf32>
    %23 = tpu.matmul %22, %20, %cst_12 {dimension_numbers = #tpu.dot_dimension_numbers<[1], [1], [0], [0], [0, 0, 1, 0], [], []>} : vector<8x4xbf16>, vector<256x4xbf16>, vector<8x256xf32> -> vector<8x256xf32>
    %24 = arith.addf %17, %23 : vector<8x256xf32>
    %25 = vector.extract_strided_slice %2 {offsets = [1, 0, 0], sizes = [16, 16, 4], strides = [1, 1, 1]} : vector<18x18x4xf32> to vector<16x16x4xf32>
    %26 = vector.shape_cast %25 : vector<16x16x4xf32> to vector<256x4xf32>
    %27 = arith.truncf %26 : vector<256x4xf32> to vector<256x4xbf16>
    %c3 = arith.constant 3 : index
    %c0_13 = arith.constant 0 : index
    %c0_14 = arith.constant 0 : index
    %28 = vector.load %arg2[%c3, %c0_13, %c0_14] : memref<9x8x4xbf16, #tpu.memory_space<vmem>>, vector<1x8x4xbf16>
    %29 = vector.shape_cast %28 : vector<1x8x4xbf16> to vector<8x4xbf16>
    %cst_15 = arith.constant dense<0.000000e+00> : vector<8x256xf32>
    %30 = tpu.matmul %29, %27, %cst_15 {dimension_numbers = #tpu.dot_dimension_numbers<[1], [1], [0], [0], [0, 0, 1, 0], [], []>} : vector<8x4xbf16>, vector<256x4xbf16>, vector<8x256xf32> -> vector<8x256xf32>
    %31 = arith.addf %24, %30 : vector<8x256xf32>
    %32 = vector.extract_strided_slice %2 {offsets = [1, 1, 0], sizes = [16, 16, 4], strides = [1, 1, 1]} : vector<18x18x4xf32> to vector<16x16x4xf32>
    %33 = vector.shape_cast %32 : vector<16x16x4xf32> to vector<256x4xf32>
    %34 = arith.truncf %33 : vector<256x4xf32> to vector<256x4xbf16>
    %c4 = arith.constant 4 : index
    %c0_16 = arith.constant 0 : index
    %c0_17 = arith.constant 0 : index
    %35 = vector.load %arg2[%c4, %c0_16, %c0_17] : memref<9x8x4xbf16, #tpu.memory_space<vmem>>, vector<1x8x4xbf16>
    %36 = vector.shape_cast %35 : vector<1x8x4xbf16> to vector<8x4xbf16>
    %cst_18 = arith.constant dense<0.000000e+00> : vector<8x256xf32>
    %37 = tpu.matmul %36, %34, %cst_18 {dimension_numbers = #tpu.dot_dimension_numbers<[1], [1], [0], [0], [0, 0, 1, 0], [], []>} : vector<8x4xbf16>, vector<256x4xbf16>, vector<8x256xf32> -> vector<8x256xf32>
    %38 = arith.addf %31, %37 : vector<8x256xf32>
    %39 = vector.extract_strided_slice %2 {offsets = [1, 2, 0], sizes = [16, 16, 4], strides = [1, 1, 1]} : vector<18x18x4xf32> to vector<16x16x4xf32>
    %40 = vector.shape_cast %39 : vector<16x16x4xf32> to vector<256x4xf32>
    %41 = arith.truncf %40 : vector<256x4xf32> to vector<256x4xbf16>
    %c5 = arith.constant 5 : index
    %c0_19 = arith.constant 0 : index
    %c0_20 = arith.constant 0 : index
    %42 = vector.load %arg2[%c5, %c0_19, %c0_20] : memref<9x8x4xbf16, #tpu.memory_space<vmem>>, vector<1x8x4xbf16>
    %43 = vector.shape_cast %42 : vector<1x8x4xbf16> to vector<8x4xbf16>
    %cst_21 = arith.constant dense<0.000000e+00> : vector<8x256xf32>
    %44 = tpu.matmul %43, %41, %cst_21 {dimension_numbers = #tpu.dot_dimension_numbers<[1], [1], [0], [0], [0, 0, 1, 0], [], []>} : vector<8x4xbf16>, vector<256x4xbf16>, vector<8x256xf32> -> vector<8x256xf32>
    %45 = arith.addf %38, %44 : vector<8x256xf32>
    %46 = vector.extract_strided_slice %2 {offsets = [2, 0, 0], sizes = [16, 16, 4], strides = [1, 1, 1]} : vector<18x18x4xf32> to vector<16x16x4xf32>
    %47 = vector.shape_cast %46 : vector<16x16x4xf32> to vector<256x4xf32>
    %48 = arith.truncf %47 : vector<256x4xf32> to vector<256x4xbf16>
    %c6 = arith.constant 6 : index
    %c0_22 = arith.constant 0 : index
    %c0_23 = arith.constant 0 : index
    %49 = vector.load %arg2[%c6, %c0_22, %c0_23] : memref<9x8x4xbf16, #tpu.memory_space<vmem>>, vector<1x8x4xbf16>
    %50 = vector.shape_cast %49 : vector<1x8x4xbf16> to vector<8x4xbf16>
    %cst_24 = arith.constant dense<0.000000e+00> : vector<8x256xf32>
    %51 = tpu.matmul %50, %48, %cst_24 {dimension_numbers = #tpu.dot_dimension_numbers<[1], [1], [0], [0], [0, 0, 1, 0], [], []>} : vector<8x4xbf16>, vector<256x4xbf16>, vector<8x256xf32> -> vector<8x256xf32>
    %52 = arith.addf %45, %51 : vector<8x256xf32>
    %53 = vector.extract_strided_slice %2 {offsets = [2, 1, 0], sizes = [16, 16, 4], strides = [1, 1, 1]} : vector<18x18x4xf32> to vector<16x16x4xf32>
    %54 = vector.shape_cast %53 : vector<16x16x4xf32> to vector<256x4xf32>
    %55 = arith.truncf %54 : vector<256x4xf32> to vector<256x4xbf16>
    %c7 = arith.constant 7 : index
    %c0_25 = arith.constant 0 : index
    %c0_26 = arith.constant 0 : index
    %56 = vector.load %arg2[%c7, %c0_25, %c0_26] : memref<9x8x4xbf16, #tpu.memory_space<vmem>>, vector<1x8x4xbf16>
    %57 = vector.shape_cast %56 : vector<1x8x4xbf16> to vector<8x4xbf16>
    %cst_27 = arith.constant dense<0.000000e+00> : vector<8x256xf32>
    %58 = tpu.matmul %57, %55, %cst_27 {dimension_numbers = #tpu.dot_dimension_numbers<[1], [1], [0], [0], [0, 0, 1, 0], [], []>} : vector<8x4xbf16>, vector<256x4xbf16>, vector<8x256xf32> -> vector<8x256xf32>
    %59 = arith.addf %52, %58 : vector<8x256xf32>
    %60 = vector.extract_strided_slice %2 {offsets = [2, 2, 0], sizes = [16, 16, 4], strides = [1, 1, 1]} : vector<18x18x4xf32> to vector<16x16x4xf32>
    %61 = vector.shape_cast %60 : vector<16x16x4xf32> to vector<256x4xf32>
    %62 = arith.truncf %61 : vector<256x4xf32> to vector<256x4xbf16>
    %c8 = arith.constant 8 : index
    %c0_28 = arith.constant 0 : index
    %c0_29 = arith.constant 0 : index
    %63 = vector.load %arg2[%c8, %c0_28, %c0_29] : memref<9x8x4xbf16, #tpu.memory_space<vmem>>, vector<1x8x4xbf16>
    %64 = vector.shape_cast %63 : vector<1x8x4xbf16> to vector<8x4xbf16>
    %cst_30 = arith.constant dense<0.000000e+00> : vector<8x256xf32>
    %65 = tpu.matmul %64, %62, %cst_30 {dimension_numbers = #tpu.dot_dimension_numbers<[1], [1], [0], [0], [0, 0, 1, 0], [], []>} : vector<8x4xbf16>, vector<256x4xbf16>, vector<8x256xf32> -> vector<8x256xf32>
    %66 = arith.addf %59, %65 : vector<8x256xf32>
    %c0_31 = arith.constant 0 : index
    %c0_32 = arith.constant 0 : index
    %67 = vector.load %arg3[%c0_31, %c0_32] : memref<8x1xf32, #tpu.memory_space<vmem>>, vector<8x1xf32>
    %68 = vector.broadcast %67 : vector<8x1xf32> to vector<8x256xf32>
    %69 = arith.addf %66, %68 : vector<8x256xf32>
    %70 = arith.mulf %69, %69 : vector<8x256xf32>
    %cst_33 = arith.constant dense<0.000000e+00> : vector<256xf32>
    %71 = vector.multi_reduction <add>, %70, %cst_33 [0] : vector<8x256xf32> to vector<256xf32>
    %72 = vector.shape_cast %71 : vector<256xf32> to vector<1x256xf32>
    %cst_34 = arith.constant 1.000000e-24 : f32
    %73 = vector.broadcast %cst_34 : f32 to vector<1x256xf32>
    %74 = arith.maximumf %72, %73 : vector<1x256xf32>
    %75 = math.rsqrt %74 : vector<1x256xf32>
    %76 = vector.broadcast %75 : vector<1x256xf32> to vector<8x256xf32>
    %77 = arith.mulf %69, %76 : vector<8x256xf32>
    %c0_35 = arith.constant 0 : index
    %c0_36 = arith.constant 0 : index
    %78 = vector.load %arg4[%c0_35, %c0_36] : memref<8x1xf32, #tpu.memory_space<vmem>>, vector<8x1xf32>
    %79 = vector.broadcast %78 : vector<8x1xf32> to vector<8x256xf32>
    %80 = arith.mulf %77, %79 : vector<8x256xf32>
    %c0_37 = arith.constant 0 : index
    %c0_38 = arith.constant 0 : index
    %c0_39 = arith.constant 0 : index
    %81 = vector.load %arg5[%c0_37, %c0_38, %c0_39] : memref<1x8x1xf32, #tpu.memory_space<vmem>>, vector<1x8x1xf32>
    %82 = vector.shape_cast %81 : vector<1x8x1xf32> to vector<8x1xf32>
    %83 = vector.broadcast %82 : vector<8x1xf32> to vector<8x256xf32>
    %84 = arith.mulf %80, %83 : vector<8x256xf32>
    %c0_40 = arith.constant 0 : index
    %c0_41 = arith.constant 0 : index
    %c0_42 = arith.constant 0 : index
    %85 = vector.load %arg6[%c0_40, %c0_41, %c0_42] : memref<1x8x1xf32, #tpu.memory_space<vmem>>, vector<1x8x1xf32>
    %86 = vector.shape_cast %85 : vector<1x8x1xf32> to vector<8x1xf32>
    %87 = vector.broadcast %86 : vector<8x1xf32> to vector<8x256xf32>
    %88 = arith.addf %84, %87 : vector<8x256xf32>
    %89 = arith.negf %88 : vector<8x256xf32>
    %90 = math.exp %89 : vector<8x256xf32>
    %cst_43 = arith.constant 1.000000e+00 : f32
    %91 = vector.broadcast %cst_43 : f32 to vector<8x256xf32>
    %92 = arith.addf %91, %90 : vector<8x256xf32>
    %93 = arith.divf %91, %92 : vector<8x256xf32>
    %94 = arith.mulf %88, %93 : vector<8x256xf32>
    %c0_44 = arith.constant 0 : index
    %c0_45 = arith.constant 0 : index
    %c0_46 = arith.constant 0 : index
    %95 = vector.load %arg7[%c0_44, %c0_45, %c0_46] : memref<1x8x256xf32, #tpu.memory_space<vmem>>, vector<1x8x256xf32>
    %96 = vector.shape_cast %95 : vector<1x8x256xf32> to vector<8x256xf32>
    %97 = vector.shape_cast %94 : vector<8x256xf32> to vector<1x8x256xf32>
    tpu.vector_store %arg7[%c0_44, %c0_45, %c0_46], %97 {strides = array<i32>} : memref<1x8x256xf32, #tpu.memory_space<vmem>>, vector<1x8x256xf32>,
    return
  }
  func.func @transform_0(%arg0: i32) -> (i32, i32, i32, i32) {
    %c0_i32 = arith.constant 0 : i32
    %c0_i32_0 = arith.constant 0 : i32
    %c0_i32_1 = arith.constant 0 : i32
    %c0_i32_2 = arith.constant 0 : i32
    return %arg0, %c0_i32, %c0_i32_0, %c0_i32_1 : i32, i32, i32, i32
  }
  func.func @transform_1(%arg0: i32) -> (i32, i32, i32) {
    %c0_i32 = arith.constant 0 : i32
    %c0_i32_0 = arith.constant 0 : i32
    %c0_i32_1 = arith.constant 0 : i32
    %c0_i32_2 = arith.constant 0 : i32
    return %c0_i32, %c0_i32_0, %c0_i32_1 : i32, i32, i32
  }
  func.func @transform_2(%arg0: i32) -> (i32, i32) {
    %c0_i32 = arith.constant 0 : i32
    %c0_i32_0 = arith.constant 0 : i32
    %c0_i32_1 = arith.constant 0 : i32
    return %c0_i32, %c0_i32_0 : i32, i32
  }
  func.func @transform_3(%arg0: i32) -> (i32, i32) {
    %c0_i32 = arith.constant 0 : i32
    %c0_i32_0 = arith.constant 0 : i32
    %c0_i32_1 = arith.constant 0 : i32
    return %c0_i32, %c0_i32_0 : i32, i32
  }
  func.func @transform_4(%arg0: i32) -> (i32, i32, i32) {
    %c0_i32 = arith.constant 0 : i32
    %c0_i32_0 = arith.constant 0 : i32
    %c0_i32_1 = arith.constant 0 : i32
    return %arg0, %c0_i32, %c0_i32_0 : i32, i32, i32
  }
  func.func @transform_5(%arg0: i32) -> (i32, i32, i32) {
    %c0_i32 = arith.constant 0 : i32
    %c0_i32_0 = arith.constant 0 : i32
    %c0_i32_1 = arith.constant 0 : i32
    return %arg0, %c0_i32, %c0_i32_0 : i32, i32, i32
  }
  func.func @transform_6(%arg0: i32) -> (i32, i32, i32) {
    %c0_i32 = arith.constant 0 : i32
    %c0_i32_0 = arith.constant 0 : i32
    %c0_i32_1 = arith.constant 0 : i32
    return %arg0, %c0_i32, %c0_i32_0 : i32, i32, i32
  }
}

</mosaic_0001>

<llo_original>
// kernel: block_forward.1
$region0: #{block_forward.1}
  #allocation0 [shape = 'u32[]', space=smem, size = 0x4, offset = 0x4, fixed_abs, tag = 'smem constant byte address 0x4 - core index']
  #allocation1 [shape = 'u32[72,128]{1,0:T(1,128)}', space=vmem, size = 0x9000, scoped, tag = 'internal scratch']
  %s0 = inlined_call_operand.vmem [shape: bf16[2,18,18,4], index: 0, kind: input, shape index: {}]
  %s1 = inlined_call_operand.vmem [shape: bf16[9,8,4], index: 1, kind: input, shape index: {}]
  %s2 = inlined_call_operand.vmem [shape: f32[8,1], index: 2, kind: input, shape index: {}]
  %s3 = inlined_call_operand.vmem [shape: f32[8,1], index: 3, kind: input, shape index: {}]
  %s4 = inlined_call_operand.vmem [shape: f32[2,8,1], index: 4, kind: input, shape index: {}]
  %s5 = inlined_call_operand.vmem [shape: f32[2,8,1], index: 5, kind: input, shape index: {}]
  %s6 = inlined_call_operand.vmem [shape: f32[2,8,256], index: 6, kind: output, shape index: {}]
  %s7 = sld [smem:[#allocation0]]
  $region57: #{block_forward.1} parent=0
    _
  %s9 = ssub.s32 1, %s7
  %s10 = scalar_select 0, %s9, %s7
  loop: start=0, step=1, limit=4
  $region2: #{block_forward.1} parent=0 // loop_pre_header
    _
  $region3: #{block_forward.1} parent=0 // loop_header
    %s12 = sphi 0, %s16
    %p13 = scmp.ge.s32.totalorder %s12, 4
    %s22 = sphi 0, %s24
    %s25 = sphi 0, %s22
    %s26 = sphi 0, %s25
    %s42 = sphi 0, %s26
    %s46 = sphi 0, %s46
    %s48 = sphi 0, %s46
    %s49 = sphi 0, %s48
    %s63 = sphi 0, %s49
    %s67 = sphi 0, %s67
    %s69 = sphi 0, %s67
    %s70 = sphi 0, %s69
    %s84 = sphi 0, %s70
    %s88 = sphi 0, %s88
    %s90 = sphi 0, %s88
    %s91 = sphi 0, %s90
    %s105 = sphi 0, %s91
    %s111 = sphi 0, %s113
    %s114 = sphi 0, %s111
    %s115 = sphi 0, %s114
    %s131 = sphi 0, %s115
    %s137 = sphi 0, %s139
    %s140 = sphi 0, %s137
    %s141 = sphi 0, %s140
    %s157 = sphi 0, %s141
    %s163 = sphi 0, %s165
    %s166 = sphi 0, %s163
    %s167 = sphi 0, %s166
    %s183 = sphi 0, %s167
  $region4: #{block_forward.1} parent=0 // loop_header_branch
    %15 = sbr.rel (%p13) target = $region8
  $region5: #{block_forward.1} parent=0 // loop_body
    %s17 = ssub.s32 %s12, 1
    %s18 = ssub.s32 %s12, 2
    %s19 = sadd.s32 %s12, 1
    %s20 = ssub.s32 %s12, %s19
    %p21 = scmp.eq.s32.totalorder %s20, 0
    %s23 = sadd.s32 %s22, 1
    %s24 = scalar_select %p21, %s22, %s23
    %p27 = pneg %p21
    %p28 = scmp.eq.s32.totalorder %s12, 1
    %p29 = por %p27, %p28
    %p30 = scmp.ne.s32.totalorder %s22, %s25
    %p31 = scmp.eq.s32.totalorder %s12, 0
    %p32 = por %p30, %p31
    %p33 = scmp.ne.s32.totalorder %s22, %s25
    %p34 = scmp.eq.s32.totalorder %s17, 1
    %p35 = por %p33, %p34
    %p36 = scmp.ne.s32.totalorder %s25, %s26
    %p37 = scmp.eq.s32.totalorder %s17, 0
    %p38 = por %p36, %p37
    %p39 = scmp.ne.s32.totalorder %s25, %s26
    %p40 = scmp.eq.s32.totalorder %s18, 1
    %p41 = por %p39, %p40
    %p43 = scmp.ne.s32.totalorder %s26, %s42
    %p44 = scmp.eq.s32.totalorder %s18, 0
    %p45 = por %p43, %p44
    %s47 = sadd.s32 %s46, 1
    %p50 = scmp.eq.s32.totalorder %s12, 1
    %p51 = scmp.ne.s32.totalorder %s46, %s48
    %p52 = scmp.eq.s32.totalorder %s12, 0
    %p53 = por %p51, %p52
    %p54 = scmp.ne.s32.totalorder %s46, %s48
    %p55 = scmp.eq.s32.totalorder %s17, 1
    %p56 = por %p54, %p55
    %p57 = scmp.ne.s32.totalorder %s48, %s49
    %p58 = scmp.eq.s32.totalorder %s17, 0
    %p59 = por %p57, %p58
    %p60 = scmp.ne.s32.totalorder %s48, %s49
    %p61 = scmp.eq.s32.totalorder %s18, 1
    %p62 = por %p60, %p61
    %p64 = scmp.ne.s32.totalorder %s49, %s63
    %p65 = scmp.eq.s32.totalorder %s18, 0
    %p66 = por %p64, %p65
    %s68 = sadd.s32 %s67, 1
    %p71 = scmp.eq.s32.totalorder %s12, 1
    %p72 = scmp.ne.s32.totalorder %s67, %s69
    %p73 = scmp.eq.s32.totalorder %s12, 0
    %p74 = por %p72, %p73
    %p75 = scmp.ne.s32.totalorder %s67, %s69
    %p76 = scmp.eq.s32.totalorder %s17, 1
    %p77 = por %p75, %p76
    %p78 = scmp.ne.s32.totalorder %s69, %s70
    %p79 = scmp.eq.s32.totalorder %s17, 0
    %p80 = por %p78, %p79
    %p81 = scmp.ne.s32.totalorder %s69, %s70
    %p82 = scmp.eq.s32.totalorder %s18, 1
    %p83 = por %p81, %p82
    %p85 = scmp.ne.s32.totalorder %s70, %s84
    %p86 = scmp.eq.s32.totalorder %s18, 0
    %p87 = por %p85, %p86
    %s89 = sadd.s32 %s88, 1
    %p92 = scmp.eq.s32.totalorder %s12, 1
    %p93 = scmp.ne.s32.totalorder %s88, %s90
    %p94 = scmp.eq.s32.totalorder %s12, 0
    %p95 = por %p93, %p94
    %p96 = scmp.ne.s32.totalorder %s88, %s90
    %p97 = scmp.eq.s32.totalorder %s17, 1
    %p98 = por %p96, %p97
    %p99 = scmp.ne.s32.totalorder %s90, %s91
    %p100 = scmp.eq.s32.totalorder %s17, 0
    %p101 = por %p99, %p100
    %p102 = scmp.ne.s32.totalorder %s90, %s91
    %p103 = scmp.eq.s32.totalorder %s18, 1
    %p104 = por %p102, %p103
    %p106 = scmp.ne.s32.totalorder %s91, %s105
    %p107 = scmp.eq.s32.totalorder %s18, 0
    %p108 = por %p106, %p107
    %s109 = ssub.s32 %s12, %s19
    %p110 = scmp.eq.s32.totalorder %s109, 0
    %s112 = sadd.s32 %s111, 1
    %s113 = scalar_select %p110, %s111, %s112
    %p116 = pneg %p110
    %p117 = scmp.eq.s32.totalorder %s12, 1
    %p118 = por %p116, %p117
    %p119 = scmp.ne.s32.totalorder %s111, %s114
    %p120 = scmp.eq.s32.totalorder %s12, 0
    %p121 = por %p119, %p120
    %p122 = scmp.ne.s32.totalorder %s111, %s114
    %p123 = scmp.eq.s32.totalorder %s17, 1
    %p124 = por %p122, %p123
    %p125 = scmp.ne.s32.totalorder %s114, %s115
    %p126 = scmp.eq.s32.totalorder %s17, 0
    %p127 = por %p125, %p126
    %p128 = scmp.ne.s32.totalorder %s114, %s115
    %p129 = scmp.eq.s32.totalorder %s18, 1
    %p130 = por %p128, %p129
    %p132 = scmp.ne.s32.totalorder %s115, %s131
    %p133 = scmp.eq.s32.totalorder %s18, 0
    %p134 = por %p132, %p133
    %s135 = ssub.s32 %s12, %s19
    %p136 = scmp.eq.s32.totalorder %s135, 0
    %s138 = sadd.s32 %s137, 1
    %s139 = scalar_select %p136, %s137, %s138
    %p142 = pneg %p136
    %p143 = scmp.eq.s32.totalorder %s12, 1
    %p144 = por %p142, %p143
    %p145 = scmp.ne.s32.totalorder %s137, %s140
    %p146 = scmp.eq.s32.totalorder %s12, 0
    %p147 = por %p145, %p146
    %p148 = scmp.ne.s32.totalorder %s137, %s140
    %p149 = scmp.eq.s32.totalorder %s17, 1
    %p150 = por %p148, %p149
    %p151 = scmp.ne.s32.totalorder %s140, %s141
    %p152 = scmp.eq.s32.totalorder %s17, 0
    %p153 = por %p151, %p152
    %p154 = scmp.ne.s32.totalorder %s140, %s141
    %p155 = scmp.eq.s32.totalorder %s18, 1
    %p156 = por %p154, %p155
    %p158 = scmp.ne.s32.totalorder %s141, %s157
    %p159 = scmp.eq.s32.totalorder %s18, 0
    %p160 = por %p158, %p159
    %s161 = ssub.s32 %s12, %s19
    %p162 = scmp.eq.s32.totalorder %s161, 0
    %s164 = sadd.s32 %s163, 1
    %s165 = scalar_select %p162, %s163, %s164
    %p168 = pneg %p162
    %p169 = scmp.eq.s32.totalorder %s12, 1
    %p170 = por %p168, %p169
    %p171 = scmp.ne.s32.totalorder %s163, %s166
    %p172 = scmp.eq.s32.totalorder %s12, 0
    %p173 = por %p171, %p172
    %p174 = scmp.ne.s32.totalorder %s163, %s166
    %p175 = scmp.eq.s32.totalorder %s17, 1
    %p176 = por %p174, %p175
    %p177 = scmp.ne.s32.totalorder %s166, %s167
    %p178 = scmp.eq.s32.totalorder %s17, 0
    %p179 = por %p177, %p178
    %p180 = scmp.ne.s32.totalorder %s166, %s167
    %p181 = scmp.eq.s32.totalorder %s18, 1
    %p182 = por %p180, %p181
    %p184 = scmp.ne.s32.totalorder %s167, %s183
    %p185 = scmp.eq.s32.totalorder %s18, 0
    %p186 = por %p184, %p185
    %p187 = scmp.le.s32.totalorder 1, %s12
    %p188 = scmp.lt.s32.totalorder %s12, 3
    %p189 = pnand %p187, %p188
    %p190 = pneg %p189
    // Predicated region
    $region9: #{block_forward.1} parent=5 // pred_check
      _
    $region10: #{block_forward.1} parent=5 // pred_check_branch
      %192 = sbr.rel (%p189) target = $region12
    $region11: #{block_forward.1} parent=5 // pred_region
      %s193 = ssub.s32 %s12, 1
      // Predicated region
      $region13: #{block_forward.1} parent=11 // pred_check
        %p194 = pneg %p59
      $region14: #{block_forward.1} parent=11 // pred_check_branch
        %196 = sbr.rel (%p194) target = $region16
      $region15: #{block_forward.1} parent=11 // pred_region
        _
      $region16: #{block_forward.1} parent=11 // pred_fallthru
        _
      // Predicated region
      $region17: #{block_forward.1} parent=11 // pred_check
        %p197 = pneg %p80
      $region18: #{block_forward.1} parent=11 // pred_check_branch
        %199 = sbr.rel (%p197) target = $region20
      $region19: #{block_forward.1} parent=11 // pred_region
        _
      $region20: #{block_forward.1} parent=11 // pred_fallthru
        _
      // Predicated region
      $region21: #{block_forward.1} parent=11 // pred_check
        %p200 = pneg %p101
      $region22: #{block_forward.1} parent=11 // pred_check_branch
        %202 = sbr.rel (%p200) target = $region24
      $region23: #{block_forward.1} parent=11 // pred_region
        _
      $region24: #{block_forward.1} parent=11 // pred_fallthru
        _
    $region12: #{block_forward.1} parent=5 // pred_fallthru
      _
    %p203 = scmp.lt.s32.totalorder %s12, 2
    // Predicated region
    $region25: #{block_forward.1} parent=5 // pred_check
      %p204 = pneg %p203
    $region26: #{block_forward.1} parent=5 // pred_check_branch
      %206 = sbr.rel (%p204) target = $region28
    $region27: #{block_forward.1} parent=5 // pred_region
      // Predicated region
      $region29: #{block_forward.1} parent=27 // pred_check
        %p207 = pneg %p32
      $region30: #{block_forward.1} parent=27 // pred_check_branch
        %209 = sbr.rel (%p207) target = $region32
      $region31: #{block_forward.1} parent=27 // pred_region
        %p210 = scmp.lt.s32.totalorder %s12, 1
        %s211 = scalar_select %p210, %s12, 1
        %s212 = smul.addr %s211, 54
        %s213 = smul.addr %s212, 4
        %s214 = scalar_lea.vmem %s0, %s213
      $region32: #{block_forward.1} parent=27 // pred_fallthru
        _
      // Predicated region
      $region33: #{block_forward.1} parent=27 // pred_check
        %p215 = pneg %p121
      $region34: #{block_forward.1} parent=27 // pred_check_branch
        %217 = sbr.rel (%p215) target = $region36
      $region35: #{block_forward.1} parent=27 // pred_region
        %p218 = scmp.lt.s32.totalorder %s12, 1
        %s219 = scalar_select %p218, %s12, 1
        %s220 = smul.addr %s219, 8
        %s221 = scalar_lea.vmem %s4, %s220
      $region36: #{block_forward.1} parent=27 // pred_fallthru
        _
      // Predicated region
      $region37: #{block_forward.1} parent=27 // pred_check
        %p222 = pneg %p147
      $region38: #{block_forward.1} parent=27 // pred_check_branch
        %224 = sbr.rel (%p222) target = $region40
      $region39: #{block_forward.1} parent=27 // pred_region
        %p225 = scmp.lt.s32.totalorder %s12, 1
        %s226 = scalar_select %p225, %s12, 1
        %s227 = smul.addr %s226, 8
        %s228 = scalar_lea.vmem %s5, %s227
      $region40: #{block_forward.1} parent=27 // pred_fallthru
        _
    $region28: #{block_forward.1} parent=5 // pred_fallthru
      _
    %p229 = scmp.le.s32.totalorder 1, %s12
    %p230 = scmp.lt.s32.totalorder %s12, 3
    %p231 = pnand %p229, %p230
    %p232 = pneg %p231
    // Predicated region
    $region41: #{block_forward.1} parent=5 // pred_check
      _
    $region42: #{block_forward.1} parent=5 // pred_check_branch
      %234 = sbr.rel (%p231) target = $region44
    $region43: #{block_forward.1} parent=5 // pred_region
      %s235 = ssub.s32 %s12, 1
      %p236 = scmp.lt.s32.totalorder %s17, 1
      %s237 = scalar_select %p236, %s17, 1
      %s238 = smul.addr %s237, 54
      %s239 = smul.addr %s238, 4
      %s240 = scalar_lea.vmem %s0, %s239
      %p241 = pneg %p38
      %p242 = pneg %p35
      %p243 = pneg %p59
      %p244 = pneg %p56
      %p245 = pneg %p80
      %p246 = pneg %p77
      %p247 = pneg %p101
      %p248 = pneg %p98
      %p249 = scmp.lt.s32.totalorder %s17, 1
      %s250 = scalar_select %p249, %s17, 1
      %s251 = smul.addr %s250, 8
      %s252 = scalar_lea.vmem %s4, %s251
      %p253 = pneg %p127
      %p254 = pneg %p124
      %p255 = scmp.lt.s32.totalorder %s17, 1
      %s256 = scalar_select %p255, %s17, 1
      %s257 = smul.addr %s256, 8
      %s258 = scalar_lea.vmem %s5, %s257
      %p259 = pneg %p153
      %p260 = pneg %p150
      %p261 = pneg %p179
      %p262 = pneg %p176
      %p263 = scmp.lt.s32.totalorder %s17, 1
      %s264 = scalar_select %p263, %s17, 1
      %s265 = smul.addr %s264, 2
      %s266 = smul.addr %s265, 8
      %s267 = scalar_lea.vmem %s6, %s266
      %p268 = scmp.lt.s32.totalorder %s17, 1
      %s269 = scalar_select %p268, %s17, 1
      %s270 = smul.addr %s269, 54
      %s271 = smul.addr %s270, 4
      %s272 = scalar_lea.vmem %s0, %s271
      %p273 = scmp.lt.s32.totalorder %s17, 1
      %s274 = scalar_select %p273, %s17, 1
      %s275 = smul.addr %s274, 8
      %s276 = scalar_lea.vmem %s4, %s275
      %p277 = scmp.lt.s32.totalorder %s17, 1
      %s278 = scalar_select %p277, %s17, 1
      %s279 = smul.addr %s278, 8
      %s280 = scalar_lea.vmem %s5, %s279
      %p281 = scmp.lt.s32.totalorder %s17, 1
      %s282 = scalar_select %p281, %s17, 1
      %s283 = smul.addr %s282, 2
      %s284 = smul.addr %s283, 8
      %s285 = scalar_lea.vmem %s6, %s284
      %v286 = vld [vmem:[%s272] sm:$0xf]
      %v287 = vld [vmem:[%s272 + $0x4] sm:$0xf]
      %v288 = vld [vmem:[%s272 + $0x8] sm:$0x1]
      %v289 = vld [vmem:[%s272 + $0xc] sm:$0xf]
      %v290 = vld [vmem:[%s272 + $0x10] sm:$0xf]
      %v291 = vld [vmem:[%s272 + $0x14] sm:$0x1]
      %v292 = vld [vmem:[%s272 + $0x18] sm:$0xf]
      %v293 = vld [vmem:[%s272 + $0x1c] sm:$0xf]
      %v294 = vld [vmem:[%s272 + $0x20] sm:$0x1]
      %v295 = vld [vmem:[%s272 + $0x24] sm:$0xf]
      %v296 = vld [vmem:[%s272 + $0x28] sm:$0xf]
      %v297 = vld [vmem:[%s272 + $0x2c] sm:$0x1]
      %v298 = vld [vmem:[%s272 + $0x30] sm:$0xf]
      %v299 = vld [vmem:[%s272 + $0x34] sm:$0xf]
      %v300 = vld [vmem:[%s272 + $0x38] sm:$0x1]
      %v301 = vld [vmem:[%s272 + $0x3c] sm:$0xf]
      %v302 = vld [vmem:[%s272 + $0x40] sm:$0xf]
      %v303 = vld [vmem:[%s272 + $0x44] sm:$0x1]
      %v304 = vld [vmem:[%s272 + $0x48] sm:$0xf]
      %v305 = vld [vmem:[%s272 + $0x4c] sm:$0xf]
      %v306 = vld [vmem:[%s272 + $0x50] sm:$0x1]
      %v307 = vld [vmem:[%s272 + $0x54] sm:$0xf]
      %v308 = vld [vmem:[%s272 + $0x58] sm:$0xf]
      %v309 = vld [vmem:[%s272 + $0x5c] sm:$0x1]
      %v310 = vld [vmem:[%s272 + $0x60] sm:$0xf]
      %v311 = vld [vmem:[%s272 + $0x64] sm:$0xf]
      %v312 = vld [vmem:[%s272 + $0x68] sm:$0x1]
      %v313 = vld [vmem:[%s272 + $0x6c] sm:$0xf]
      %v314 = vld [vmem:[%s272 + $0x70] sm:$0xf]
      %v315 = vld [vmem:[%s272 + $0x74] sm:$0x1]
      %v316 = vld [vmem:[%s272 + $0x78] sm:$0xf]
      %v317 = vld [vmem:[%s272 + $0x7c] sm:$0xf]
      %v318 = vld [vmem:[%s272 + $0x80] sm:$0x1]
      %v319 = vld [vmem:[%s272 + $0x84] sm:$0xf]
      %v320 = vld [vmem:[%s272 + $0x88] sm:$0xf]
      %v321 = vld [vmem:[%s272 + $0x8c] sm:$0x1]
      %v322 = vld [vmem:[%s272 + $0x90] sm:$0xf]
      %v323 = vld [vmem:[%s272 + $0x94] sm:$0xf]
      %v324 = vld [vmem:[%s272 + $0x98] sm:$0x1]
      %v325 = vld [vmem:[%s272 + $0x9c] sm:$0xf]
      %v326 = vld [vmem:[%s272 + $0xa0] sm:$0xf]
      %v327 = vld [vmem:[%s272 + $0xa4] sm:$0x1]
      %v328 = vld [vmem:[%s272 + $0xa8] sm:$0xf]
      %v329 = vld [vmem:[%s272 + $0xac] sm:$0xf]
      %v330 = vld [vmem:[%s272 + $0xb0] sm:$0x1]
      %v331 = vld [vmem:[%s272 + $0xb4] sm:$0xf]
      %v332 = vld [vmem:[%s272 + $0xb8] sm:$0xf]
      %v333 = vld [vmem:[%s272 + $0xbc] sm:$0x1]
      %v334 = vld [vmem:[%s272 + $0xc0] sm:$0xf]
      %v335 = vld [vmem:[%s272 + $0xc4] sm:$0xf]
      %v336 = vld [vmem:[%s272 + $0xc8] sm:$0x1]
      %v337 = vld [vmem:[%s272 + $0xcc] sm:$0xf]
      %v338 = vld [vmem:[%s272 + $0xd0] sm:$0xf]
      %v339 = vld [vmem:[%s272 + $0xd4] sm:$0x1]
      %v340 = vunpack.c.l.bf16 %v286
      %v341 = vunpack.c.l.bf16 %v287
      %v342 = vunpack.c.l.bf16 %v288
      %v343 = vunpack.c.l.bf16 %v289
      %v344 = vunpack.c.l.bf16 %v290
      %v345 = vunpack.c.l.bf16 %v291
      %v346 = vunpack.c.l.bf16 %v292
      %v347 = vunpack.c.l.bf16 %v293
      %v348 = vunpack.c.l.bf16 %v294
      %v349 = vunpack.c.l.bf16 %v295
      %v350 = vunpack.c.l.bf16 %v296
      %v351 = vunpack.c.l.bf16 %v297
      %v352 = vunpack.c.l.bf16 %v298
      %v353 = vunpack.c.l.bf16 %v299
      %v354 = vunpack.c.l.bf16 %v300
      %v355 = vunpack.c.l.bf16 %v301
      %v356 = vunpack.c.l.bf16 %v302
      %v357 = vunpack.c.l.bf16 %v303
      %v358 = vunpack.c.l.bf16 %v304
      %v359 = vunpack.c.l.bf16 %v305
      %v360 = vunpack.c.l.bf16 %v306
      %v361 = vunpack.c.l.bf16 %v307
      %v362 = vunpack.c.l.bf16 %v308
      %v363 = vunpack.c.l.bf16 %v309
      %v364 = vunpack.c.l.bf16 %v310
      %v365 = vunpack.c.l.bf16 %v311
      %v366 = vunpack.c.l.bf16 %v312
      %v367 = vunpack.c.l.bf16 %v313
      %v368 = vunpack.c.l.bf16 %v314
      %v369 = vunpack.c.l.bf16 %v315
      %v370 = vunpack.c.l.bf16 %v316
      %v371 = vunpack.c.l.bf16 %v317
      %v372 = vunpack.c.l.bf16 %v318
      %v373 = vunpack.c.l.bf16 %v319
      %v374 = vunpack.c.l.bf16 %v320
      %v375 = vunpack.c.l.bf16 %v321
      %v376 = vunpack.c.l.bf16 %v322
      %v377 = vunpack.c.l.bf16 %v323
      %v378 = vunpack.c.l.bf16 %v324
      %v379 = vunpack.c.l.bf16 %v325
      %v380 = vunpack.c.l.bf16 %v326
      %v381 = vunpack.c.l.bf16 %v327
      %v382 = vunpack.c.l.bf16 %v328
      %v383 = vunpack.c.l.bf16 %v329
      %v384 = vunpack.c.l.bf16 %v330
      %v385 = vunpack.c.l.bf16 %v331
      %v386 = vunpack.c.l.bf16 %v332
      %v387 = vunpack.c.l.bf16 %v333
      %v388 = vunpack.c.l.bf16 %v334
      %v389 = vunpack.c.l.bf16 %v335
      %v390 = vunpack.c.l.bf16 %v336
      %v391 = vunpack.c.l.bf16 %v337
      %v392 = vunpack.c.l.bf16 %v338
      %v393 = vunpack.c.l.bf16 %v339
      %v394 = vpack.c.bf16 %v341, %v340
      %v395 = vpack.c.bf16 %v344, %v343
      %v396 = vpack.c.bf16 %v347, %v346
      %v397 = vpack.c.bf16 %v350, %v349
      %v398 = vpack.c.bf16 %v353, %v352
      %v399 = vpack.c.bf16 %v356, %v355
      %v400 = vpack.c.bf16 %v359, %v358
      %v401 = vpack.c.bf16 %v362, %v361
      %v402 = vpack.c.bf16 %v365, %v364
      %v403 = vpack.c.bf16 %v368, %v367
      %v404 = vpack.c.bf16 %v371, %v370
      %v405 = vpack.c.bf16 %v374, %v373
      %v406 = vpack.c.bf16 %v377, %v376
      %v407 = vpack.c.bf16 %v380, %v379
      %v408 = vpack.c.bf16 %v383, %v382
      %v409 = vpack.c.bf16 %v386, %v385
      %v410 = vld [vmem:[%s1] sm:$0xf]
      %vm459 = vcmask 1046528
      %v460 = vrot.slane %v340, 1
      %v461 = vrot.slane %v341, 1
      %v462 = vsel %vm459, %v460, %v461
      %v463 = vrot.slane %v342, 1
      %v464 = vsel %vm459, %v461, %v463
      %v465 = vrot.slane %v343, 1
      %v466 = vrot.slane %v344, 1
      %v467 = vsel %vm459, %v465, %v466
      %v468 = vrot.slane %v345, 1
      %v469 = vsel %vm459, %v466, %v468
      %v470 = vrot.slane %v346, 1
      %v471 = vrot.slane %v347, 1
      %v472 = vsel %vm459, %v470, %v471
      %v473 = vrot.slane %v348, 1
      %v474 = vsel %vm459, %v471, %v473
      %v475 = vrot.slane %v349, 1
      %v476 = vrot.slane %v350, 1
      %v477 = vsel %vm459, %v475, %v476
      %v478 = vrot.slane %v351, 1
      %v479 = vsel %vm459, %v476, %v478
      %v480 = vrot.slane %v352, 1
      %v481 = vrot.slane %v353, 1
      %v482 = vsel %vm459, %v480, %v481
      %v483 = vrot.slane %v354, 1
      %v484 = vsel %vm459, %v481, %v483
      %v485 = vrot.slane %v355, 1
      %v486 = vrot.slane %v356, 1
      %v487 = vsel %vm459, %v485, %v486
      %v488 = vrot.slane %v357, 1
      %v489 = vsel %vm459, %v486, %v488
      %v490 = vrot.slane %v358, 1
      %v491 = vrot.slane %v359, 1
      %v492 = vsel %vm459, %v490, %v491
      %v493 = vrot.slane %v360, 1
      %v494 = vsel %vm459, %v491, %v493
      %v495 = vrot.slane %v361, 1
      %v496 = vrot.slane %v362, 1
      %v497 = vsel %vm459, %v495, %v496
      %v498 = vrot.slane %v363, 1
      %v499 = vsel %vm459, %v496, %v498
      %v500 = vrot.slane %v364, 1
      %v501 = vrot.slane %v365, 1
      %v502 = vsel %vm459, %v500, %v501
      %v503 = vrot.slane %v366, 1
      %v504 = vsel %vm459, %v501, %v503
      %v505 = vrot.slane %v367, 1
      %v506 = vrot.slane %v368, 1
      %v507 = vsel %vm459, %v505, %v506
      %v508 = vrot.slane %v369, 1
      %v509 = vsel %vm459, %v506, %v508
      %v510 = vrot.slane %v370, 1
      %v511 = vrot.slane %v371, 1
      %v512 = vsel %vm459, %v510, %v511
      %v513 = vrot.slane %v372, 1
      %v514 = vsel %vm459, %v511, %v513
      %v515 = vrot.slane %v373, 1
      %v516 = vrot.slane %v374, 1
      %v517 = vsel %vm459, %v515, %v516
      %v518 = vrot.slane %v375, 1
      %v519 = vsel %vm459, %v516, %v518
      %v520 = vrot.slane %v376, 1
      %v521 = vrot.slane %v377, 1
      %v522 = vsel %vm459, %v520, %v521
      %v523 = vrot.slane %v378, 1
      %v524 = vsel %vm459, %v521, %v523
      %v525 = vrot.slane %v379, 1
      %v526 = vrot.slane %v380, 1
      %v527 = vsel %vm459, %v525, %v526
      %v528 = vrot.slane %v381, 1
      %v529 = vsel %vm459, %v526, %v528
      %v530 = vrot.slane %v382, 1
      %v531 = vrot.slane %v383, 1
      %v532 = vsel %vm459, %v530, %v531
      %v533 = vrot.slane %v384, 1
      %v534 = vsel %vm459, %v531, %v533
      %v535 = vrot.slane %v385, 1
      %v536 = vrot.slane %v386, 1
      %v537 = vsel %vm459, %v535, %v536
      %v538 = vrot.slane %v387, 1
      %v539 = vsel %vm459, %v536, %v538
      %v572 = vpack.c.bf16 %v464, %v462
      %v573 = vpack.c.bf16 %v469, %v467
      %v574 = vpack.c.bf16 %v474, %v472
      %v575 = vpack.c.bf16 %v479, %v477
      %v576 = vpack.c.bf16 %v484, %v482
      %v577 = vpack.c.bf16 %v489, %v487
      %v578 = vpack.c.bf16 %v494, %v492
      %v579 = vpack.c.bf16 %v499, %v497
      %v580 = vpack.c.bf16 %v504, %v502
      %v581 = vpack.c.bf16 %v509, %v507
      %v582 = vpack.c.bf16 %v514, %v512
      %v583 = vpack.c.bf16 %v519, %v517
      %v584 = vpack.c.bf16 %v524, %v522
      %v585 = vpack.c.bf16 %v529, %v527
      %v586 = vpack.c.bf16 %v534, %v532
      %v587 = vpack.c.bf16 %v539, %v537
      %s588 = scalar_lea.vmem %s1, 4
      %v589 = vld [vmem:[%s588] sm:$0xf]
      %vm590 = vcmask 31744
      %v592 = vsel %vm590, %v589, 0
      %v595 = vsel %vm590, %v572, 0
      %v598 = vsel %vm590, %v573, 0
      %v601 = vsel %vm590, %v574, 0
      %v604 = vsel %vm590, %v575, 0
      %v607 = vsel %vm590, %v576, 0
      %v610 = vsel %vm590, %v577, 0
      %v613 = vsel %vm590, %v578, 0
      %v616 = vsel %vm590, %v579, 0
      %v619 = vsel %vm590, %v580, 0
      %v622 = vsel %vm590, %v581, 0
      %v625 = vsel %vm590, %v582, 0
      %v628 = vsel %vm590, %v583, 0
      %v631 = vsel %vm590, %v584, 0
      %v634 = vsel %vm590, %v585, 0
      %v637 = vsel %vm590, %v586, 0
      %v640 = vsel %vm590, %v587, 0
      %642 = vmatpush.bf16.xpose.msra.mxu0 %v616
      %643 = vmatpush.bf16.xpose.msra.mxu0 %v613
      %644 = vmatpush.bf16.xpose.msra.mxu0 %v610
      %645 = vmatpush.bf16.xpose.msra.mxu0 %v607
      %646 = vmatpush.bf16.xpose.msra.mxu0 %v604
      %647 = vmatpush.bf16.xpose.msra.mxu0 %v601
      %648 = vmatpush.bf16.xpose.msra.mxu0 %v598
      %649 = vmatpush.bf16.xpose.msra.mxu0 %v595
      %650 = vmatmul.bf16.gmra.mxu0 %v592
      %v651 = vpop.f32.mrf.mxu0
      %v652 = vadd.f32 0.0, %v651
      %v653 = vpop.f32.mrf.mxu0
      %654 = vdwg.mxu0
      %655 = vmatpush.bf16.xpose.msra.mxu0 %v640
      %656 = vmatpush.bf16.xpose.msra.mxu0 %v637
      %657 = vmatpush.bf16.xpose.msra.mxu0 %v634
      %658 = vmatpush.bf16.xpose.msra.mxu0 %v631
      %659 = vmatpush.bf16.xpose.msra.mxu0 %v628
      %660 = vmatpush.bf16.xpose.msra.mxu0 %v625
      %661 = vmatpush.bf16.xpose.msra.mxu0 %v622
      %662 = vmatpush.bf16.xpose.msra.mxu0 %v619
      %663 = vmatmul.bf16.gmra.mxu0 %v592
      %v664 = vpop.f32.mrf.mxu0
      %v665 = vadd.f32 0.0, %v664
      %v666 = vpop.f32.mrf.mxu0
      %667 = vdwg.mxu0
      %v669 = vsel %vm590, %v410, 0
      %v672 = vsel %vm590, %v394, 0
      %v675 = vsel %vm590, %v395, 0
      %v678 = vsel %vm590, %v396, 0
      %v681 = vsel %vm590, %v397, 0
      %v684 = vsel %vm590, %v398, 0
      %v687 = vsel %vm590, %v399, 0
      %v690 = vsel %vm590, %v400, 0
      %v693 = vsel %vm590, %v401, 0
      %v696 = vsel %vm590, %v402, 0
      %v699 = vsel %vm590, %v403, 0
      %v702 = vsel %vm590, %v404, 0
      %v705 = vsel %vm590, %v405, 0
      %v708 = vsel %vm590, %v406, 0
      %v711 = vsel %vm590, %v407, 0
      %v714 = vsel %vm590, %v408, 0
      %v717 = vsel %vm590, %v409, 0
      %719 = vmatpush.bf16.xpose.msra.mxu0 %v693
      %720 = vmatpush.bf16.xpose.msra.mxu0 %v690
      %721 = vmatpush.bf16.xpose.msra.mxu0 %v687
      %722 = vmatpush.bf16.xpose.msra.mxu0 %v684
      %723 = vmatpush.bf16.xpose.msra.mxu0 %v681
      %724 = vmatpush.bf16.xpose.msra.mxu0 %v678
      %725 = vmatpush.bf16.xpose.msra.mxu0 %v675
      %726 = vmatpush.bf16.xpose.msra.mxu0 %v672
      %727 = vmatmul.bf16.gmra.mxu0 %v669
      %v728 = vpop.f32.mrf.mxu0
      %v729 = vadd.f32 %v652, %v728
      %v730 = vpop.f32.mrf.mxu0
      %731 = vdwg.mxu0
      %732 = vmatpush.bf16.xpose.msra.mxu0 %v717
      %733 = vmatpush.bf16.xpose.msra.mxu0 %v714
      %734 = vmatpush.bf16.xpose.msra.mxu0 %v711
      %735 = vmatpush.bf16.xpose.msra.mxu0 %v708
      %736 = vmatpush.bf16.xpose.msra.mxu0 %v705
      %737 = vmatpush.bf16.xpose.msra.mxu0 %v702
      %738 = vmatpush.bf16.xpose.msra.mxu0 %v699
      %739 = vmatpush.bf16.xpose.msra.mxu0 %v696
      %740 = vmatmul.bf16.gmra.mxu0 %v669
      %v741 = vpop.f32.mrf.mxu0
      %v742 = vadd.f32 %v665, %v741
      %v743 = vpop.f32.mrf.mxu0
      %744 = vdwg.mxu0
      %vm745 = vcmask 1045504
      %v746 = vrot.slane %v340, 2
      %v747 = vrot.slane %v341, 2
      %v748 = vsel %vm745, %v746, %v747
      %v749 = vrot.slane %v342, 2
      %v750 = vsel %vm745, %v747, %v749
      %v751 = vrot.slane %v343, 2
      %v752 = vrot.slane %v344, 2
      %v753 = vsel %vm745, %v751, %v752
      %v754 = vrot.slane %v345, 2
      %v755 = vsel %vm745, %v752, %v754
      %v756 = vrot.slane %v346, 2
      %v757 = vrot.slane %v347, 2
      %v758 = vsel %vm745, %v756, %v757
      %v759 = vrot.slane %v348, 2
      %v760 = vsel %vm745, %v757, %v759
      %v761 = vrot.slane %v349, 2
      %v762 = vrot.slane %v350, 2
      %v763 = vsel %vm745, %v761, %v762
      %v764 = vrot.slane %v351, 2
      %v765 = vsel %vm745, %v762, %v764
      %v766 = vrot.slane %v352, 2
      %v767 = vrot.slane %v353, 2
      %v768 = vsel %vm745, %v766, %v767
      %v769 = vrot.slane %v354, 2
      %v770 = vsel %vm745, %v767, %v769
      %v771 = vrot.slane %v355, 2
      %v772 = vrot.slane %v356, 2
      %v773 = vsel %vm745, %v771, %v772
      %v774 = vrot.slane %v357, 2
      %v775 = vsel %vm745, %v772, %v774
      %v776 = vrot.slane %v358, 2
      %v777 = vrot.slane %v359, 2
      %v778 = vsel %vm745, %v776, %v777
      %v779 = vrot.slane %v360, 2
      %v780 = vsel %vm745, %v777, %v779
      %v781 = vrot.slane %v361, 2
      %v782 = vrot.slane %v362, 2
      %v783 = vsel %vm745, %v781, %v782
      %v784 = vrot.slane %v363, 2
      %v785 = vsel %vm745, %v782, %v784
      %v786 = vrot.slane %v364, 2
      %v787 = vrot.slane %v365, 2
      %v788 = vsel %vm745, %v786, %v787
      %v789 = vrot.slane %v366, 2
      %v790 = vsel %vm745, %v787, %v789
      %v791 = vrot.slane %v367, 2
      %v792 = vrot.slane %v368, 2
      %v793 = vsel %vm745, %v791, %v792
      %v794 = vrot.slane %v369, 2
      %v795 = vsel %vm745, %v792, %v794
      %v796 = vrot.slane %v370, 2
      %v797 = vrot.slane %v371, 2
      %v798 = vsel %vm745, %v796, %v797
      %v799 = vrot.slane %v372, 2
      %v800 = vsel %vm745, %v797, %v799
      %v801 = vrot.slane %v373, 2
      %v802 = vrot.slane %v374, 2
      %v803 = vsel %vm745, %v801, %v802
      %v804 = vrot.slane %v375, 2
      %v805 = vsel %vm745, %v802, %v804
      %v806 = vrot.slane %v376, 2
      %v807 = vrot.slane %v377, 2
      %v808 = vsel %vm745, %v806, %v807
      %v809 = vrot.slane %v378, 2
      %v810 = vsel %vm745, %v807, %v809
      %v811 = vrot.slane %v379, 2
      %v812 = vrot.slane %v380, 2
      %v813 = vsel %vm745, %v811, %v812
      %v814 = vrot.slane %v381, 2
      %v815 = vsel %vm745, %v812, %v814
      %v816 = vrot.slane %v382, 2
      %v817 = vrot.slane %v383, 2
      %v818 = vsel %vm745, %v816, %v817
      %v819 = vrot.slane %v384, 2
      %v820 = vsel %vm745, %v817, %v819
      %v821 = vrot.slane %v385, 2
      %v822 = vrot.slane %v386, 2
      %v823 = vsel %vm745, %v821, %v822
      %v824 = vrot.slane %v387, 2
      %v825 = vsel %vm745, %v822, %v824
      %v858 = vpack.c.bf16 %v750, %v748
      %v859 = vpack.c.bf16 %v755, %v753
      %v860 = vpack.c.bf16 %v760, %v758
      %v861 = vpack.c.bf16 %v765, %v763
      %v862 = vpack.c.bf16 %v770, %v768
      %v863 = vpack.c.bf16 %v775, %v773
      %v864 = vpack.c.bf16 %v780, %v778
      %v865 = vpack.c.bf16 %v785, %v783
      %v866 = vpack.c.bf16 %v790, %v788
      %v867 = vpack.c.bf16 %v795, %v793
      %v868 = vpack.c.bf16 %v800, %v798
      %v869 = vpack.c.bf16 %v805, %v803
      %v870 = vpack.c.bf16 %v810, %v808
      %v871 = vpack.c.bf16 %v815, %v813
      %v872 = vpack.c.bf16 %v820, %v818
      %v873 = vpack.c.bf16 %v825, %v823
      %s874 = scalar_lea.vmem %s1, 8
      %v875 = vld [vmem:[%s874] sm:$0xf]
      %v877 = vsel %vm590, %v875, 0
      %v880 = vsel %vm590, %v858, 0
      %v883 = vsel %vm590, %v859, 0
      %v886 = vsel %vm590, %v860, 0
      %v889 = vsel %vm590, %v861, 0
      %v892 = vsel %vm590, %v862, 0
      %v895 = vsel %vm590, %v863, 0
      %v898 = vsel %vm590, %v864, 0
      %v901 = vsel %vm590, %v865, 0
      %v904 = vsel %vm590, %v866, 0
      %v907 = vsel %vm590, %v867, 0
      %v910 = vsel %vm590, %v868, 0
      %v913 = vsel %vm590, %v869, 0
      %v916 = vsel %vm590, %v870, 0
      %v919 = vsel %vm590, %v871, 0
      %v922 = vsel %vm590, %v872, 0
      %v925 = vsel %vm590, %v873, 0
      %927 = vmatpush.bf16.xpose.msra.mxu0 %v901
      %928 = vmatpush.bf16.xpose.msra.mxu0 %v898
      %929 = vmatpush.bf16.xpose.msra.mxu0 %v895
      %930 = vmatpush.bf16.xpose.msra.mxu0 %v892
      %931 = vmatpush.bf16.xpose.msra.mxu0 %v889
      %932 = vmatpush.bf16.xpose.msra.mxu0 %v886
      %933 = vmatpush.bf16.xpose.msra.mxu0 %v883
      %934 = vmatpush.bf16.xpose.msra.mxu0 %v880
      %935 = vmatmul.bf16.gmra.mxu0 %v877
      %v936 = vpop.f32.mrf.mxu0
      %v937 = vadd.f32 0.0, %v936
      %v938 = vpop.f32.mrf.mxu0
      %939 = vdwg.mxu0
      %940 = vmatpush.bf16.xpose.msra.mxu0 %v925
      %941 = vmatpush.bf16.xpose.msra.mxu0 %v922
      %942 = vmatpush.bf16.xpose.msra.mxu0 %v919
      %943 = vmatpush.bf16.xpose.msra.mxu0 %v916
      %944 = vmatpush.bf16.xpose.msra.mxu0 %v913
      %945 = vmatpush.bf16.xpose.msra.mxu0 %v910
      %946 = vmatpush.bf16.xpose.msra.mxu0 %v907
      %947 = vmatpush.bf16.xpose.msra.mxu0 %v904
      %948 = vmatmul.bf16.gmra.mxu0 %v877
      %v949 = vpop.f32.mrf.mxu0
      %v950 = vadd.f32 0.0, %v949
      %v951 = vpop.f32.mrf.mxu0
      %952 = vdwg.mxu0
      %v953 = vadd.f32 %v729, %v937
      %v954 = vadd.f32 %v742, %v950
      %v955 = vpack.c.bf16 %v389, %v388
      %s956 = scalar_lea.vmem %s1, 12
      %v957 = vld [vmem:[%s956] sm:$0xf]
      %v959 = vsel %vm590, %v957, 0
      %v962 = vsel %vm590, %v955, 0
      %964 = vmatpush.bf16.xpose.msra.mxu0 %v696
      %965 = vmatpush.bf16.xpose.msra.mxu0 %v693
      %966 = vmatpush.bf16.xpose.msra.mxu0 %v690
      %967 = vmatpush.bf16.xpose.msra.mxu0 %v687
      %968 = vmatpush.bf16.xpose.msra.mxu0 %v684
      %969 = vmatpush.bf16.xpose.msra.mxu0 %v681
      %970 = vmatpush.bf16.xpose.msra.mxu0 %v678
      %971 = vmatpush.bf16.xpose.msra.mxu0 %v675
      %972 = vmatmul.bf16.gmra.mxu0 %v959
      %v973 = vpop.f32.mrf.mxu0
      %v974 = vadd.f32 0.0, %v973
      %v975 = vpop.f32.mrf.mxu0
      %976 = vdwg.mxu0
      %977 = vmatpush.bf16.xpose.msra.mxu0 %v962
      %978 = vmatpush.bf16.xpose.msra.mxu0 %v717
      %979 = vmatpush.bf16.xpose.msra.mxu0 %v714
      %980 = vmatpush.bf16.xpose.msra.mxu0 %v711
      %981 = vmatpush.bf16.xpose.msra.mxu0 %v708
      %982 = vmatpush.bf16.xpose.msra.mxu0 %v705
      %983 = vmatpush.bf16.xpose.msra.mxu0 %v702
      %984 = vmatpush.bf16.xpose.msra.mxu0 %v699
      %985 = vmatmul.bf16.gmra.mxu0 %v959
      %v986 = vpop.f32.mrf.mxu0
      %v987 = vadd.f32 0.0, %v986
      %v988 = vpop.f32.mrf.mxu0
      %989 = vdwg.mxu0
      %v990 = vadd.f32 %v953, %v974
      %v991 = vadd.f32 %v954, %v987
      %v995 = vrot.slane %v388, 1
      %v996 = vrot.slane %v389, 1
      %v997 = vsel %vm459, %v995, %v996
      %v998 = vrot.slane %v390, 1
      %v999 = vsel %vm459, %v996, %v998
      %v1002 = vpack.c.bf16 %v999, %v997
      %s1003 = scalar_lea.vmem %s1, 16
      %v1004 = vld [vmem:[%s1003] sm:$0xf]
      %v1006 = vsel %vm590, %v1004, 0
      %v1009 = vsel %vm590, %v1002, 0
      %1011 = vmatpush.bf16.xpose.msra.mxu0 %v619
      %1012 = vmatpush.bf16.xpose.msra.mxu0 %v616
      %1013 = vmatpush.bf16.xpose.msra.mxu0 %v613
      %1014 = vmatpush.bf16.xpose.msra.mxu0 %v610
      %1015 = vmatpush.bf16.xpose.msra.mxu0 %v607
      %1016 = vmatpush.bf16.xpose.msra.mxu0 %v604
      %1017 = vmatpush.bf16.xpose.msra.mxu0 %v601
      %1018 = vmatpush.bf16.xpose.msra.mxu0 %v598
      %1019 = vmatmul.bf16.gmra.mxu0 %v1006
      %v1020 = vpop.f32.mrf.mxu0
      %v1021 = vadd.f32 0.0, %v1020
      %v1022 = vpop.f32.mrf.mxu0
      %1023 = vdwg.mxu0
      %1024 = vmatpush.bf16.xpose.msra.mxu0 %v1009
      %1025 = vmatpush.bf16.xpose.msra.mxu0 %v640
      %1026 = vmatpush.bf16.xpose.msra.mxu0 %v637
      %1027 = vmatpush.bf16.xpose.msra.mxu0 %v634
      %1028 = vmatpush.bf16.xpose.msra.mxu0 %v631
      %1029 = vmatpush.bf16.xpose.msra.mxu0 %v628
      %1030 = vmatpush.bf16.xpose.msra.mxu0 %v625
      %1031 = vmatpush.bf16.xpose.msra.mxu0 %v622
      %1032 = vmatmul.bf16.gmra.mxu0 %v1006
      %v1033 = vpop.f32.mrf.mxu0
      %v1034 = vadd.f32 0.0, %v1033
      %v1035 = vpop.f32.mrf.mxu0
      %1036 = vdwg.mxu0
      %v1037 = vadd.f32 %v990, %v1021
      %v1038 = vadd.f32 %v991, %v1034
      %v1039 = vrot.slane %v388, 2
      %v1040 = vrot.slane %v389, 2
      %v1041 = vsel %vm745, %v1039, %v1040
      %v1042 = vrot.slane %v390, 2
      %v1043 = vsel %vm745, %v1040, %v1042
      %v1046 = vpack.c.bf16 %v1043, %v1041
      %s1047 = scalar_lea.vmem %s1, 20
      %v1048 = vld [vmem:[%s1047] sm:$0xf]
      %v1050 = vsel %vm590, %v1048, 0
      %v1053 = vsel %vm590, %v1046, 0
      %1055 = vmatpush.bf16.xpose.msra.mxu0 %v904
      %1056 = vmatpush.bf16.xpose.msra.mxu0 %v901
      %1057 = vmatpush.bf16.xpose.msra.mxu0 %v898
      %1058 = vmatpush.bf16.xpose.msra.mxu0 %v895
      %1059 = vmatpush.bf16.xpose.msra.mxu0 %v892
      %1060 = vmatpush.bf16.xpose.msra.mxu0 %v889
      %1061 = vmatpush.bf16.xpose.msra.mxu0 %v886
      %1062 = vmatpush.bf16.xpose.msra.mxu0 %v883
      %1063 = vmatmul.bf16.gmra.mxu0 %v1050
      %v1064 = vpop.f32.mrf.mxu0
      %v1065 = vadd.f32 0.0, %v1064
      %v1066 = vpop.f32.mrf.mxu0
      %1067 = vdwg.mxu0
      %1068 = vmatpush.bf16.xpose.msra.mxu0 %v1053
      %1069 = vmatpush.bf16.xpose.msra.mxu0 %v925
      %1070 = vmatpush.bf16.xpose.msra.mxu0 %v922
      %1071 = vmatpush.bf16.xpose.msra.mxu0 %v919
      %1072 = vmatpush.bf16.xpose.msra.mxu0 %v916
      %1073 = vmatpush.bf16.xpose.msra.mxu0 %v913
      %1074 = vmatpush.bf16.xpose.msra.mxu0 %v910
      %1075 = vmatpush.bf16.xpose.msra.mxu0 %v907
      %1076 = vmatmul.bf16.gmra.mxu0 %v1050
      %v1077 = vpop.f32.mrf.mxu0
      %v1078 = vadd.f32 0.0, %v1077
      %v1079 = vpop.f32.mrf.mxu0
      %1080 = vdwg.mxu0
      %v1081 = vadd.f32 %v1037, %v1065
      %v1082 = vadd.f32 %v1038, %v1078
      %v1083 = vpack.c.bf16 %v392, %v391
      %s1084 = scalar_lea.vmem %s1, 24
      %v1085 = vld [vmem:[%s1084] sm:$0xf]
      %v1087 = vsel %vm590, %v1085, 0
      %v1090 = vsel %vm590, %v1083, 0
      %1092 = vmatpush.bf16.xpose.msra.mxu0 %v699
      %1093 = vmatpush.bf16.xpose.msra.mxu0 %v696
      %1094 = vmatpush.bf16.xpose.msra.mxu0 %v693
      %1095 = vmatpush.bf16.xpose.msra.mxu0 %v690
      %1096 = vmatpush.bf16.xpose.msra.mxu0 %v687
      %1097 = vmatpush.bf16.xpose.msra.mxu0 %v684
      %1098 = vmatpush.bf16.xpose.msra.mxu0 %v681
      %1099 = vmatpush.bf16.xpose.msra.mxu0 %v678
      %1100 = vmatmul.bf16.gmra.mxu0 %v1087
      %v1101 = vpop.f32.mrf.mxu0
      %v1102 = vadd.f32 0.0, %v1101
      %v1103 = vpop.f32.mrf.mxu0
      %1104 = vdwg.mxu0
      %1105 = vmatpush.bf16.xpose.msra.mxu0 %v1090
      %1106 = vmatpush.bf16.xpose.msra.mxu0 %v962
      %1107 = vmatpush.bf16.xpose.msra.mxu0 %v717
      %1108 = vmatpush.bf16.xpose.msra.mxu0 %v714
      %1109 = vmatpush.bf16.xpose.msra.mxu0 %v711
      %1110 = vmatpush.bf16.xpose.msra.mxu0 %v708
      %1111 = vmatpush.bf16.xpose.msra.mxu0 %v705
      %1112 = vmatpush.bf16.xpose.msra.mxu0 %v702
      %1113 = vmatmul.bf16.gmra.mxu0 %v1087
      %v1114 = vpop.f32.mrf.mxu0
      %v1115 = vadd.f32 0.0, %v1114
      %v1116 = vpop.f32.mrf.mxu0
      %1117 = vdwg.mxu0
      %v1118 = vadd.f32 %v1081, %v1102
      %v1119 = vadd.f32 %v1082, %v1115
      %v1123 = vrot.slane %v391, 1
      %v1124 = vrot.slane %v392, 1
      %v1125 = vsel %vm459, %v1123, %v1124
      %v1126 = vrot.slane %v393, 1
      %v1127 = vsel %vm459, %v1124, %v1126
      %v1130 = vpack.c.bf16 %v1127, %v1125
      %s1131 = scalar_lea.vmem %s1, 28
      %v1132 = vld [vmem:[%s1131] sm:$0xf]
      %v1134 = vsel %vm590, %v1132, 0
      %v1137 = vsel %vm590, %v1130, 0
      %1139 = vmatpush.bf16.xpose.msra.mxu0 %v622
      %1140 = vmatpush.bf16.xpose.msra.mxu0 %v619
      %1141 = vmatpush.bf16.xpose.msra.mxu0 %v616
      %1142 = vmatpush.bf16.xpose.msra.mxu0 %v613
      %1143 = vmatpush.bf16.xpose.msra.mxu0 %v610
      %1144 = vmatpush.bf16.xpose.msra.mxu0 %v607
      %1145 = vmatpush.bf16.xpose.msra.mxu0 %v604
      %1146 = vmatpush.bf16.xpose.msra.mxu0 %v601
      %1147 = vmatmul.bf16.gmra.mxu0 %v1134
      %v1148 = vpop.f32.mrf.mxu0
      %v1149 = vadd.f32 0.0, %v1148
      %v1150 = vpop.f32.mrf.mxu0
      %1151 = vdwg.mxu0
      %1152 = vmatpush.bf16.xpose.msra.mxu0 %v1137
      %1153 = vmatpush.bf16.xpose.msra.mxu0 %v1009
      %1154 = vmatpush.bf16.xpose.msra.mxu0 %v640
      %1155 = vmatpush.bf16.xpose.msra.mxu0 %v637
      %1156 = vmatpush.bf16.xpose.msra.mxu0 %v634
      %1157 = vmatpush.bf16.xpose.msra.mxu0 %v631
      %1158 = vmatpush.bf16.xpose.msra.mxu0 %v628
      %1159 = vmatpush.bf16.xpose.msra.mxu0 %v625
      %1160 = vmatmul.bf16.gmra.mxu0 %v1134
      %v1161 = vpop.f32.mrf.mxu0
      %v1162 = vadd.f32 0.0, %v1161
      %v1163 = vpop.f32.mrf.mxu0
      %1164 = vdwg.mxu0
      %v1165 = vadd.f32 %v1118, %v1149
      %v1166 = vadd.f32 %v1119, %v1162
      %v1167 = vrot.slane %v391, 2
      %v1168 = vrot.slane %v392, 2
      %v1169 = vsel %vm745, %v1167, %v1168
      %v1170 = vrot.slane %v393, 2
      %v1171 = vsel %vm745, %v1168, %v1170
      %v1174 = vpack.c.bf16 %v1171, %v1169
      %s1175 = scalar_lea.vmem %s1, 32
      %v1176 = vld [vmem:[%s1175] sm:$0xf]
      %v1178 = vsel %vm590, %v1176, 0
      %v1181 = vsel %vm590, %v1174, 0
      %1183 = vmatpush.bf16.xpose.msra.mxu0 %v907
      %1184 = vmatpush.bf16.xpose.msra.mxu0 %v904
      %1185 = vmatpush.bf16.xpose.msra.mxu0 %v901
      %1186 = vmatpush.bf16.xpose.msra.mxu0 %v898
      %1187 = vmatpush.bf16.xpose.msra.mxu0 %v895
      %1188 = vmatpush.bf16.xpose.msra.mxu0 %v892
      %1189 = vmatpush.bf16.xpose.msra.mxu0 %v889
      %1190 = vmatpush.bf16.xpose.msra.mxu0 %v886
      %1191 = vmatmul.bf16.gmra.mxu0 %v1178
      %v1192 = vpop.f32.mrf.mxu0
      %v1193 = vadd.f32 0.0, %v1192
      %v1194 = vpop.f32.mrf.mxu0
      %1195 = vdwg.mxu0
      %1196 = vmatpush.bf16.xpose.msra.mxu0 %v1181
      %1197 = vmatpush.bf16.xpose.msra.mxu0 %v1053
      %1198 = vmatpush.bf16.xpose.msra.mxu0 %v925
      %1199 = vmatpush.bf16.xpose.msra.mxu0 %v922
      %1200 = vmatpush.bf16.xpose.msra.mxu0 %v919
      %1201 = vmatpush.bf16.xpose.msra.mxu0 %v916
      %1202 = vmatpush.bf16.xpose.msra.mxu0 %v913
      %1203 = vmatpush.bf16.xpose.msra.mxu0 %v910
      %1204 = vmatmul.bf16.gmra.mxu0 %v1178
      %v1205 = vpop.f32.mrf.mxu0
      %v1206 = vadd.f32 0.0, %v1205
      %v1207 = vpop.f32.mrf.mxu0
      %1208 = vdwg.mxu0
      %v1209 = vadd.f32 %v1165, %v1193
      %v1210 = vadd.f32 %v1166, %v1206
      %v1211 = vld [vmem:[%s2] sm:$0xff]
      %1213 = vset.pattern.permute.xlu0 0
      %1214 = vperm.xlu0 %1213, %v1211
      %v1215 = vpop.permute.xlu0 %1214
      %v1217 = vadd.f32 %v1209, %v1215
      %v1218 = vadd.f32 %v1210, %v1215
      %v1219 = vmul.f32 %v1217, %v1217
      %v1220 = vmul.f32 %v1218, %v1218
      %v1221 = vrot.slane %v1219, 4
      %v1222 = vadd.f32 %v1219, %v1221
      %v1223 = vrot.slane %v1222, 2
      %v1224 = vadd.f32 %v1222, %v1223
      %v1225 = vrot.slane %v1224, 1
      %v1226 = vadd.f32 %v1224, %v1225
      %v1227 = vrot.slane %v1220, 4
      %v1228 = vadd.f32 %v1220, %v1227
      %v1229 = vrot.slane %v1228, 2
      %v1230 = vadd.f32 %v1228, %v1229
      %v1231 = vrot.slane %v1230, 1
      %v1232 = vadd.f32 %v1230, %v1231
      %v1233 = vmax.f32 %v1226, 1e-24
      %v1234 = vmax.f32 %v1232, 1e-24
      %v1235 = vrsqrt.pop %v1233
      %v1236 = vmul.f32 %v1235, %v1233
      %v1237 = vmul.f32 %v1236, %v1235
      %v1238 = vmul.f32 0.5, %v1237
      %v1239 = vsub.f32 1.5, %v1238
      %v1240 = vmul.f32 %v1235, %v1239
      %vm1241 = vweird.f32 %v1233
      %vm1242 = vweird.f32 %v1235
      %vm1243 = vmor %vm1241, %vm1242
      %v1244 = vsel %vm1243, %v1235, %v1240
      %v1245 = vrsqrt.pop %v1234
      %v1246 = vmul.f32 %v1245, %v1234
      %v1247 = vmul.f32 %v1246, %v1245
      %v1248 = vmul.f32 0.5, %v1247
      %v1249 = vsub.f32 1.5, %v1248
      %v1250 = vmul.f32 %v1245, %v1249
      %vm1251 = vweird.f32 %v1234
      %vm1252 = vweird.f32 %v1245
      %vm1253 = vmor %vm1251, %vm1252
      %v1254 = vsel %vm1253, %v1245, %v1250
      %v1255 = vmul.f32 %v1217, %v1244
      %v1256 = vmul.f32 %v1218, %v1254
      %v1257 = vld [vmem:[%s3] sm:$0xff]
      %1259 = vset.pattern.permute.xlu0 0
      %1260 = vperm.xlu0 %1259, %v1257
      %v1261 = vpop.permute.xlu0 %1260
      %v1263 = vmul.f32 %v1255, %v1261
      %v1264 = vmul.f32 %v1256, %v1261
      %v1265 = vld [vmem:[%s276] sm:$0xff]
      %1267 = vset.pattern.permute.xlu0 0
      %1268 = vperm.xlu0 %1267, %v1265
      %v1269 = vpop.permute.xlu0 %1268
      %v1271 = vmul.f32 %v1263, %v1269
      %v1272 = vmul.f32 %v1264, %v1269
      %v1273 = vld [vmem:[%s280] sm:$0xff]
      %1275 = vset.pattern.permute.xlu0 0
      %1276 = vperm.xlu0 %1275, %v1273
      %v1277 = vpop.permute.xlu0 %1276
      %v1279 = vadd.f32 %v1271, %v1277
      %v1280 = vadd.f32 %v1272, %v1277
      %v1281 = vxor.u32 %v1279, 2147483648
      %v1282 = vxor.u32 %v1280, 2147483648
      %v1283 = vmul.f32 %v1281, 1.442695
      %v1284 = vpow.pop %v1283
      %v1285 = vmul.f32 %v1282, 1.442695
      %v1286 = vpow.pop %v1285
      %v1287 = vadd.f32 %v1284, 1.0
      %v1288 = vadd.f32 %v1286, 1.0
      %v1289 = vrcp.pop %v1287
      %v1290 = vmul.f32 %v1287, %v1289
      %v1291 = vsub.f32 1.0, %v1290
      %v1292 = vmul.f32 %v1289, %v1291
      %v1293 = vadd.f32 %v1289, %v1292
      %vm1294 = vweird.f32 %v1287
      %vm1295 = vweird.f32 %v1289
      %vm1296 = vmor %vm1294, %vm1295
      %v1297 = vsel %vm1296, %v1289, %v1293
      %v1298 = vand.u32 2147483647, %v1287
      %vm1299 = vcmp.eq.f32.partialorder %v1298, 8.507059e+37
      %v1300 = vand.u32 %v1287, 2147483648
      %v1301 = vor.u32 1.1754944e-38, %v1300
      %v1302 = vsel %vm1299, %v1301, %v1297
      %v1303 = vmul.f32 1.0, %v1302
      %v1304 = vrcp.pop %v1288
      %v1305 = vmul.f32 %v1288, %v1304
      %v1306 = vsub.f32 1.0, %v1305
      %v1307 = vmul.f32 %v1304, %v1306
      %v1308 = vadd.f32 %v1304, %v1307
      %vm1309 = vweird.f32 %v1288
      %vm1310 = vweird.f32 %v1304
      %vm1311 = vmor %vm1309, %vm1310
      %v1312 = vsel %vm1311, %v1304, %v1308
      %v1313 = vand.u32 2147483647, %v1288
      %vm1314 = vcmp.eq.f32.partialorder %v1313, 8.507059e+37
      %v1315 = vand.u32 %v1288, 2147483648
      %v1316 = vor.u32 1.1754944e-38, %v1315
      %v1317 = vsel %vm1314, %v1316, %v1312
      %v1318 = vmul.f32 1.0, %v1317
      %v1319 = vmul.f32 %v1279, %v1303
      %v1320 = vmul.f32 %v1280, %v1318
      %1321 = vst [vmem:[%s285] sm:$0xff] %v1319
      %1322 = vst [vmem:[%s285 + $0x8] sm:$0xff] %v1320
      %p1323 = scmp.lt.s32.totalorder %s17, 1
      %s1324 = scalar_select %p1323, %s17, 1
      %s1325 = smul.addr %s1324, 2
      %s1326 = smul.addr %s1325, 8
      %s1327 = scalar_lea.vmem %s6, %s1326
      // Predicated region
      $region45: #{block_forward.1} parent=43 // pred_check
        %p1328 = pneg %p176
      $region46: #{block_forward.1} parent=43 // pred_check_branch
        %1330 = sbr.rel (%p1328) target = $region48
      $region47: #{block_forward.1} parent=43 // pred_region
        _
      $region48: #{block_forward.1} parent=43 // pred_fallthru
        _
    $region44: #{block_forward.1} parent=5 // pred_fallthru
      _
    %p1331 = scmp.le.s32.totalorder 2, %s12
    // Predicated region
    $region49: #{block_forward.1} parent=5 // pred_check
      %p1332 = pneg %p1331
    $region50: #{block_forward.1} parent=5 // pred_check_branch
      %1334 = sbr.rel (%p1332) target = $region52
    $region51: #{block_forward.1} parent=5 // pred_region
      %s1335 = ssub.s32 %s12, 2
      // Predicated region
      $region53: #{block_forward.1} parent=51 // pred_check
        %p1336 = pneg %p182
      $region54: #{block_forward.1} parent=51 // pred_check_branch
        %1338 = sbr.rel (%p1336) target = $region56
      $region55: #{block_forward.1} parent=51 // pred_region
        %p1339 = scmp.lt.s32.totalorder %s18, 1
        %s1340 = scalar_select %p1339, %s18, 1
        %s1341 = smul.addr %s1340, 2
        %s1342 = smul.addr %s1341, 8
        %s1343 = scalar_lea.vmem %s6, %s1342
      $region56: #{block_forward.1} parent=51 // pred_fallthru
        _
    $region52: #{block_forward.1} parent=5 // pred_fallthru
      _
  $region6: #{block_forward.1} parent=0 // loop_footer
    %s16 = sadd.s32 1, %s12
  $region7: #{block_forward.1} parent=0 // loop_footer_branch
    %11 = sbr.rel target = $region3
  $region8: #{block_forward.1} parent=0 // loop_exit
    _

</llo_original>
